<compile_context>
chip_gen: v5e
topology: v5e:2x2
jax: 0.10.0
libtpu: 0.0.40
codegen_flags: <defaults>
</compile_context>

<pallas_src>
import functools

import jax
import jax.numpy as jnp
from jax import lax
from jax.experimental import pallas as pl
from jax.experimental.pallas import tpu as pltpu

EXPANSION = 4
_VMEM_LIMIT = 48 * 1024 * 1024


def _round_up(a, b):
    return (a + b - 1) // b * b


def _pick_tile_rows(m):
    """Row-tile size: target 512, keep >=2 grid steps, multiple of 16."""
    if m >= 1024:
        return 512
    return min(512, _round_up(max(m // 2, 16), 16))


def _pad_rows(a, mp):
    m = a.shape[0]
    if mp == m:
        return a
    return jnp.pad(a, ((0, mp - m), (0, 0)))


# ----------------------------------------------------------------------------
# Kernel A: y = relu(x*pre_sc+pre_sh) @ W  [; y = y*post_sc+post_sh ; relu]
# ----------------------------------------------------------------------------
def _pre_act_matmul_kernel(x_ref, w_ref, presc_ref, presh_ref, *rest,
                           post_affine, post_relu):
    if post_affine:
        postsc_ref, postsh_ref, o_ref = rest
    else:
        (o_ref,) = rest
    x = x_ref[...].astype(jnp.float32)               # affine/relu in f32 (VPU)
    x = jnp.maximum(x * presc_ref[...] + presh_ref[...], 0.0)
    y = jnp.dot(x.astype(jnp.bfloat16), w_ref[...],  # bf16 feeds the MXU
                preferred_element_type=jnp.float32)
    if post_affine:
        y = y * postsc_ref[...] + postsh_ref[...]
    if post_relu:
        y = jnp.maximum(y, 0.0)
    o_ref[...] = y.astype(o_ref.dtype)


def pre_act_matmul(x, w, pre_scale, pre_shift, post_scale=None,
                   post_shift=None, *, post_relu=False,
                   out_dtype=jnp.float32):
    """x: (M, K) bf16, w: (K, N) bf16, per-channel f32 affines."""
    M, K = x.shape
    K2, N = w.shape
    assert K == K2
    TM = _pick_tile_rows(M)
    Mp = _round_up(M, TM)
    grid = (Mp // TM,)
    post_affine = post_scale is not None

    inputs = [_pad_rows(x, Mp), w,
              pre_scale.reshape(1, K).astype(jnp.float32),
              pre_shift.reshape(1, K).astype(jnp.float32)]
    in_specs = [pl.BlockSpec((TM, K), lambda i: (i, 0)),   # x row tile
                pl.BlockSpec((K, N), lambda i: (0, 0)),    # weights (resident)
                pl.BlockSpec((1, K), lambda i: (0, 0)),
                pl.BlockSpec((1, K), lambda i: (0, 0))]
    if post_affine:
        inputs += [post_scale.reshape(1, N).astype(jnp.float32),
                   post_shift.reshape(1, N).astype(jnp.float32)]
        in_specs += [pl.BlockSpec((1, N), lambda i: (0, 0)),
                     pl.BlockSpec((1, N), lambda i: (0, 0))]

    kernel = functools.partial(_pre_act_matmul_kernel,
                               post_affine=post_affine, post_relu=post_relu)
    out = pl.pallas_call(
        kernel,
        out_shape=jax.ShapeDtypeStruct((Mp, N), out_dtype),
        grid_spec=pltpu.PrefetchScalarGridSpec(
            num_scalar_prefetch=0,
            grid=grid,
            in_specs=in_specs,
            out_specs=pl.BlockSpec((TM, N), lambda i: (i, 0))),
        compiler_params=pltpu.CompilerParams(
            dimension_semantics=("parallel",),
            vmem_limit_bytes=_VMEM_LIMIT),
    )(*inputs)
    return out[:M] if Mp != M else out


# ----------------------------------------------------------------------------
# Kernel B: out = relu(bn3(patches @ W2)) @ W3 + residual
#           (conv2 + bn3 + relu + conv3 + skip-add, fused per row tile)
# ----------------------------------------------------------------------------
def _bottleneck_tail_kernel(p_ref, w2_ref, sc3_ref, sh3_ref, w3_ref,
                            res_ref, o_ref):
    h = jnp.dot(p_ref[...], w2_ref[...], preferred_element_type=jnp.float32)
    h = jnp.maximum(h * sc3_ref[...] + sh3_ref[...], 0.0)
    y = jnp.dot(h.astype(jnp.bfloat16), w3_ref[...],
                preferred_element_type=jnp.float32)
    y = y + res_ref[...]
    o_ref[...] = y.astype(o_ref.dtype)


def bottleneck_tail(patches, w2, sc3, sh3, w3, residual):
    """patches: (M, 9C) bf16, w2: (9C, P) bf16, w3: (P, Cout) bf16,
    residual: (M, Cout) f32 -> (M, Cout) f32."""
    M, K9 = patches.shape
    P = w2.shape[1]
    Cout = w3.shape[1]
    assert w2.shape[0] == K9 and w3.shape[0] == P
    assert residual.shape == (M, Cout)
    TM = _pick_tile_rows(M)
    Mp = _round_up(M, TM)
    grid = (Mp // TM,)

    out = pl.pallas_call(
        _bottleneck_tail_kernel,
        out_shape=jax.ShapeDtypeStruct((Mp, Cout), jnp.float32),
        grid_spec=pltpu.PrefetchScalarGridSpec(
            num_scalar_prefetch=0,
            grid=grid,
            in_specs=[pl.BlockSpec((TM, K9), lambda i: (i, 0)),   # patches
                      pl.BlockSpec((K9, P), lambda i: (0, 0)),    # w2 resident
                      pl.BlockSpec((1, P), lambda i: (0, 0)),     # bn3 scale
                      pl.BlockSpec((1, P), lambda i: (0, 0)),     # bn3 shift
                      pl.BlockSpec((P, Cout), lambda i: (0, 0)),  # w3 resident
                      pl.BlockSpec((TM, Cout), lambda i: (i, 0))],  # residual
            out_specs=pl.BlockSpec((TM, Cout), lambda i: (i, 0))),
        compiler_params=pltpu.CompilerParams(
            dimension_semantics=("parallel",),
            vmem_limit_bytes=_VMEM_LIMIT),
    )(_pad_rows(patches, Mp), w2,
      sc3.reshape(1, P).astype(jnp.float32),
      sh3.reshape(1, P).astype(jnp.float32),
      w3, _pad_rows(residual, Mp))
    return out[:M] if Mp != M else out


# ----------------------------------------------------------------------------
# PreActBottleneck forward built on the fused kernels
# ----------------------------------------------------------------------------
def _fold_bn(gamma, beta, mean, var, eps=1e-5):
    scale = gamma / jnp.sqrt(var + eps)
    shift = beta - mean * scale
    return scale, shift


def _im2col_3x3(h, stride):
    """h: (N, H, W, C) bf16 -> patches (N*Ho*Wo, 9*C) bf16, pad=1."""
    N, H, W, C = h.shape
    Ho = (H - 1) // stride + 1
    Wo = (W - 1) // stride + 1
    hp = jnp.pad(h, ((0, 0), (1, 1), (1, 1), (0, 0)))
    cols = []
    for dy in range(3):
        for dx in range(3):
            win = hp[:, dy:dy + (Ho - 1) * stride + 1:stride,
                        dx:dx + (Wo - 1) * stride + 1:stride, :]
            cols.append(win)
    patches = jnp.concatenate(cols, axis=-1)          # (N, Ho, Wo, 9*C)
    return patches.reshape(N * Ho * Wo, 9 * C), Ho, Wo


def preact_bottleneck(x, params, stride):
    """x: (N, H, W, Cin) f32 NHWC.  Returns (N, Ho, Wo, 4*planes) f32."""
    N, H, W, Cin = x.shape
    planes = params["w1"].shape[1]
    Cout = EXPANSION * planes
    has_shortcut = (stride != 1) or (Cin != Cout)

    sc1, sh1 = _fold_bn(*params["bn1"])
    sc2, sh2 = _fold_bn(*params["bn2"])
    sc3, sh3 = _fold_bn(*params["bn3"])

    Ho = (H - 1) // stride + 1
    Wo = (W - 1) // stride + 1

    x_bf = x.astype(jnp.bfloat16)
    w1 = params["w1"].astype(jnp.bfloat16)
    w2 = params["w2"].reshape(9 * planes, planes).astype(jnp.bfloat16)
    w3 = params["w3"].astype(jnp.bfloat16)

    # ---- conv1 (1x1): relu(bn2(conv1(relu(bn1(x))))) kept in bf16 ----------
    h = pre_act_matmul(x_bf.reshape(N * H * W, Cin), w1, sc1, sh1,
                       sc2, sh2, post_relu=True, out_dtype=jnp.bfloat16)
    h = h.reshape(N, H, W, planes)

    # ---- shortcut branch ----------------------------------------------------
    if has_shortcut:
        # 1x1 stride-s conv on relu(bn1(x)); the pointwise pre-activation
        # commutes with spatial subsampling, so subsample first.
        xs = x_bf[:, ::stride, ::stride, :].reshape(N * Ho * Wo, Cin)
        shortcut = pre_act_matmul(xs, params["wsc"].astype(jnp.bfloat16),
                                  sc1, sh1, out_dtype=jnp.float32)
    else:
        shortcut = x.reshape(N * H * W, Cout)

    # ---- conv2 (3x3, stride, pad 1) + bn3 + relu + conv3 (1x1) + residual ---
    patches, Ho, Wo = _im2col_3x3(h, stride)
    out = bottleneck_tail(patches, w2, sc3, sh3, w3, shortcut)
    return out.reshape(N, Ho, Wo, Cout)


# ----------------------------------------------------------------------------
# Pure-JAX f32 reference (lax.conv) for validation
# ----------------------------------------------------------------------------
def reference(x, params, stride):
    N, H, W, Cin = x.shape
    planes = params["w1"].shape[1]
    Cout = EXPANSION * planes
    has_shortcut = (stride != 1) or (Cin != Cout)
    dn = ("NHWC", "HWIO", "NHWC")

    def bn(v, p):
        sc, sh = _fold_bn(*p)
        return v * sc + sh

    out = jax.nn.relu(bn(x, params["bn1"]))
    if has_shortcut:
        wsc4 = params["wsc"].reshape(1, 1, Cin, Cout)
        shortcut = lax.conv_general_dilated(out, wsc4, (stride, stride),
                                            "VALID", dimension_numbers=dn)
    else:
        shortcut = x
    w14 = params["w1"].reshape(1, 1, Cin, planes)
    h = lax.conv_general_dilated(out, w14, (1, 1), "VALID",
                                 dimension_numbers=dn)
    h = jax.nn.relu(bn(h, params["bn2"]))
    h = lax.conv_general_dilated(h, params["w2"], (stride, stride),
                                 ((1, 1), (1, 1)), dimension_numbers=dn)
    h = jax.nn.relu(bn(h, params["bn3"]))
    w34 = params["w3"].reshape(1, 1, planes, Cout)
    h = lax.conv_general_dilated(h, w34, (1, 1), "VALID",
                                 dimension_numbers=dn)
    return h + shortcut


# ----------------------------------------------------------------------------
def make_params(key, in_planes, planes):
    Cout = EXPANSION * planes
    ks = jax.random.split(key, 16)

    def bn_params(k, c):
        k1, k2, k3, k4 = jax.random.split(k, 4)
        gamma = jax.random.uniform(k1, (c,), jnp.float32, 0.5, 1.5)
        beta = jax.random.normal(k2, (c,), jnp.float32) * 0.1
        mean = jax.random.normal(k3, (c,), jnp.float32) * 0.1
        var = jax.random.uniform(k4, (c,), jnp.float32, 0.5, 1.5)
        return (gamma, beta, mean, var)

    params = {
        "bn1": bn_params(ks[0], in_planes),
        "bn2": bn_params(ks[1], planes),
        "bn3": bn_params(ks[2], planes),
        "w1": jax.random.normal(ks[3], (in_planes, planes), jnp.float32) * 0.1,
        "w2": jax.random.normal(ks[4], (3, 3, planes, planes), jnp.float32) * 0.1,
        "w3": jax.random.normal(ks[5], (planes, Cout), jnp.float32) * 0.1,
        "wsc": jax.random.normal(ks[6], (in_planes, Cout), jnp.float32) * 0.1,
    }
    return params


if __name__ == "__main__":
    key = jax.random.PRNGKey(0)
    k_x, k_p = jax.random.split(key)

    # Small shapes: batch=2, in_planes=8, planes=4 (=> out channels 16),
    # spatial 16x16, stride=2 (exercises the strided conv + shortcut conv).
    N, H, W = 2, 16, 16
    in_planes, planes, stride = 8, 4, 2

    x = jax.random.normal(k_x, (N, H, W, in_planes), jnp.float32)  # NHWC
    params = make_params(k_p, in_planes, planes)

    out = preact_bottleneck(x, params, stride)
    out = jax.block_until_ready(out)

    ref = jax.block_until_ready(reference(x, params, stride))
    assert out.shape == ref.shape, (out.shape, ref.shape)
    # bf16 MXU feeds vs. f32 reference -> looser tolerance than pure f32.
    assert jnp.allclose(out, ref, atol=5e-2, rtol=5e-2), (
        float(jnp.max(jnp.abs(out - ref))))

    print("KERNEL_OK")
</pallas_src>

<mosaic_0001>
module attributes {stable_mosaic.version = 11 : i64} {
  func.func @_pre_act_matmul_kernel(%arg0: i32, %arg1: memref<256x8xbf16, #tpu.memory_space<vmem>>, %arg2: memref<8x4xbf16, #tpu.memory_space<vmem>>, %arg3: memref<1x8xf32, #tpu.memory_space<vmem>>, %arg4: memref<1x8xf32, #tpu.memory_space<vmem>>, %arg5: memref<1x4xf32, #tpu.memory_space<vmem>>, %arg6: memref<1x4xf32, #tpu.memory_space<vmem>>, %arg7: memref<256x4xbf16, #tpu.memory_space<vmem>>) attributes {dimension_semantics = [#tpu.dimension_semantics<parallel>], iteration_bounds = array<i64: 2>, scalar_prefetch = 0 : i64, scratch_operands = 0 : i64, tpu.core_type = #tpu.core_type<tc>, window_params = [{transform_indices = @transform_0, window_bounds = array<i64: 256, 8>}, {pipeline_mode = #tpu.pipeline_mode<synchronous>, transform_indices = @transform_1, window_bounds = array<i64: 8, 4>}, {pipeline_mode = #tpu.pipeline_mode<synchronous>, transform_indices = @transform_2, window_bounds = array<i64: 1, 8>}, {pipeline_mode = #tpu.pipeline_mode<synchronous>, transform_indices = @transform_3, window_bounds = array<i64: 1, 8>}, {pipeline_mode = #tpu.pipeline_mode<synchronous>, transform_indices = @transform_4, window_bounds = array<i64: 1, 4>}, {pipeline_mode = #tpu.pipeline_mode<synchronous>, transform_indices = @transform_5, window_bounds = array<i64: 1, 4>}, {transform_indices = @transform_6, window_bounds = array<i64: 256, 4>}]} {
    %c0 = arith.constant 0 : index
    %c0_0 = arith.constant 0 : index
    %0 = vector.load %arg1[%c0, %c0_0] : memref<256x8xbf16, #tpu.memory_space<vmem>>, vector<256x8xbf16>
    %1 = arith.extf %0 : vector<256x8xbf16> to vector<256x8xf32>
    %c0_1 = arith.constant 0 : index
    %c0_2 = arith.constant 0 : index
    %2 = vector.load %arg3[%c0_1, %c0_2] : memref<1x8xf32, #tpu.memory_space<vmem>>, vector<1x8xf32>
    %3 = vector.broadcast %2 : vector<1x8xf32> to vector<256x8xf32>
    %4 = arith.mulf %1, %3 : vector<256x8xf32>
    %c0_3 = arith.constant 0 : index
    %c0_4 = arith.constant 0 : index
    %5 = vector.load %arg4[%c0_3, %c0_4] : memref<1x8xf32, #tpu.memory_space<vmem>>, vector<1x8xf32>
    %6 = vector.broadcast %5 : vector<1x8xf32> to vector<256x8xf32>
    %7 = arith.addf %4, %6 : vector<256x8xf32>
    %cst = arith.constant 0.000000e+00 : f32
    %8 = vector.broadcast %cst : f32 to vector<256x8xf32>
    %9 = arith.maximumf %7, %8 : vector<256x8xf32>
    %10 = arith.truncf %9 : vector<256x8xf32> to vector<256x8xbf16>
    %c0_5 = arith.constant 0 : index
    %c0_6 = arith.constant 0 : index
    %11 = vector.load %arg2[%c0_5, %c0_6] : memref<8x4xbf16, #tpu.memory_space<vmem>>, vector<8x4xbf16>
    %cst_7 = arith.constant dense<0.000000e+00> : vector<256x4xf32>
    %12 = tpu.matmul %10, %11, %cst_7 {dimension_numbers = #tpu.dot_dimension_numbers<[1], [0], [0], [1], [0, 0, 1, 1], [], []>} : vector<256x8xbf16>, vector<8x4xbf16>, vector<256x4xf32> -> vector<256x4xf32>
    %c0_8 = arith.constant 0 : index
    %c0_9 = arith.constant 0 : index
    %13 = vector.load %arg5[%c0_8, %c0_9] : memref<1x4xf32, #tpu.memory_space<vmem>>, vector<1x4xf32>
    %14 = vector.broadcast %13 : vector<1x4xf32> to vector<256x4xf32>
    %15 = arith.mulf %12, %14 : vector<256x4xf32>
    %c0_10 = arith.constant 0 : index
    %c0_11 = arith.constant 0 : index
    %16 = vector.load %arg6[%c0_10, %c0_11] : memref<1x4xf32, #tpu.memory_space<vmem>>, vector<1x4xf32>
    %17 = vector.broadcast %16 : vector<1x4xf32> to vector<256x4xf32>
    %18 = arith.addf %15, %17 : vector<256x4xf32>
    %cst_12 = arith.constant 0.000000e+00 : f32
    %19 = vector.broadcast %cst_12 : f32 to vector<256x4xf32>
    %20 = arith.maximumf %18, %19 : vector<256x4xf32>
    %21 = arith.truncf %20 : vector<256x4xf32> to vector<256x4xbf16>
    %c0_13 = arith.constant 0 : index
    %c0_14 = arith.constant 0 : index
    %22 = vector.load %arg7[%c0_13, %c0_14] : memref<256x4xbf16, #tpu.memory_space<vmem>>, vector<256x4xbf16>
    tpu.vector_store %arg7[%c0_13, %c0_14], %21 {strides = array<i32>} : memref<256x4xbf16, #tpu.memory_space<vmem>>, vector<256x4xbf16>,
    return
  }
  func.func @transform_0(%arg0: i32) -> (i32, i32) {
    %c0_i32 = arith.constant 0 : i32
    %c0_i32_0 = arith.constant 0 : i32
    return %arg0, %c0_i32 : i32, i32
  }
  func.func @transform_1(%arg0: i32) -> (i32, i32) {
    %c0_i32 = arith.constant 0 : i32
    %c0_i32_0 = arith.constant 0 : i32
    %c0_i32_1 = arith.constant 0 : i32
    return %c0_i32, %c0_i32_0 : i32, i32
  }
  func.func @transform_2(%arg0: i32) -> (i32, i32) {
    %c0_i32 = arith.constant 0 : i32
    %c0_i32_0 = arith.constant 0 : i32
    %c0_i32_1 = arith.constant 0 : i32
    return %c0_i32, %c0_i32_0 : i32, i32
  }
  func.func @transform_3(%arg0: i32) -> (i32, i32) {
    %c0_i32 = arith.constant 0 : i32
    %c0_i32_0 = arith.constant 0 : i32
    %c0_i32_1 = arith.constant 0 : i32
    return %c0_i32, %c0_i32_0 : i32, i32
  }
  func.func @transform_4(%arg0: i32) -> (i32, i32) {
    %c0_i32 = arith.constant 0 : i32
    %c0_i32_0 = arith.constant 0 : i32
    %c0_i32_1 = arith.constant 0 : i32
    return %c0_i32, %c0_i32_0 : i32, i32
  }
  func.func @transform_5(%arg0: i32) -> (i32, i32) {
    %c0_i32 = arith.constant 0 : i32
    %c0_i32_0 = arith.constant 0 : i32
    %c0_i32_1 = arith.constant 0 : i32
    return %c0_i32, %c0_i32_0 : i32, i32
  }
  func.func @transform_6(%arg0: i32) -> (i32, i32) {
    %c0_i32 = arith.constant 0 : i32
    %c0_i32_0 = arith.constant 0 : i32
    return %arg0, %c0_i32 : i32, i32
  }
}

</mosaic_0001>

<llo_original>
// kernel: tpu_custom_call.1
$region0: #{tpu_custom_call.1}
  #allocation0 [shape = 'u32[]', space=smem, size = 0x4, offset = 0x4, fixed_abs, tag = 'smem constant byte address 0x4 - core index']
  #allocation1 [shape = 'u32[72,128]{1,0:T(1,128)}', space=vmem, size = 0x9000, scoped, tag = 'internal scratch']
  %s0 = inlined_call_operand.vmem [shape: bf16[512,8], index: 0, kind: input, shape index: {}]
  %s1 = inlined_call_operand.vmem [shape: bf16[8,4], index: 1, kind: input, shape index: {}]
  %s2 = inlined_call_operand.vmem [shape: f32[1,8], index: 2, kind: input, shape index: {}]
  %s3 = inlined_call_operand.vmem [shape: f32[1,8], index: 3, kind: input, shape index: {}]
  %s4 = inlined_call_operand.vmem [shape: f32[1,4], index: 4, kind: input, shape index: {}]
  %s5 = inlined_call_operand.vmem [shape: f32[1,4], index: 5, kind: input, shape index: {}]
  %s6 = inlined_call_operand.vmem [shape: bf16[512,4], index: 6, kind: output, shape index: {}]
  %s7 = sld [smem:[#allocation0]]
  $region57: #{tpu_custom_call.1} parent=0
    _
  %s9 = ssub.s32 1, %s7
  %s10 = scalar_select 0, %s9, %s7
  loop: start=0, step=1, limit=4
  $region2: #{tpu_custom_call.1} parent=0 // loop_pre_header
    _
  $region3: #{tpu_custom_call.1} parent=0 // loop_header
    %s12 = sphi 0, %s16
    %p13 = scmp.ge.s32.totalorder %s12, 4
    %s22 = sphi 0, %s24
    %s25 = sphi 0, %s22
    %s26 = sphi 0, %s25
    %s42 = sphi 0, %s26
    %s46 = sphi 0, %s46
    %s48 = sphi 0, %s46
    %s49 = sphi 0, %s48
    %s63 = sphi 0, %s49
    %s67 = sphi 0, %s67
    %s69 = sphi 0, %s67
    %s70 = sphi 0, %s69
    %s84 = sphi 0, %s70
    %s88 = sphi 0, %s88
    %s90 = sphi 0, %s88
    %s91 = sphi 0, %s90
    %s105 = sphi 0, %s91
    %s109 = sphi 0, %s109
    %s111 = sphi 0, %s109
    %s112 = sphi 0, %s111
    %s126 = sphi 0, %s112
    %s130 = sphi 0, %s130
    %s132 = sphi 0, %s130
    %s133 = sphi 0, %s132
    %s147 = sphi 0, %s133
    %s153 = sphi 0, %s155
    %s156 = sphi 0, %s153
    %s157 = sphi 0, %s156
    %s173 = sphi 0, %s157
  $region4: #{tpu_custom_call.1} parent=0 // loop_header_branch
    %15 = sbr.rel (%p13) target = $region8
  $region5: #{tpu_custom_call.1} parent=0 // loop_body
    %s17 = ssub.s32 %s12, 1
    %s18 = ssub.s32 %s12, 2
    %s19 = sadd.s32 %s12, 1
    %s20 = ssub.s32 %s12, %s19
    %p21 = scmp.eq.s32.totalorder %s20, 0
    %s23 = sadd.s32 %s22, 1
    %s24 = scalar_select %p21, %s22, %s23
    %p27 = pneg %p21
    %p28 = scmp.eq.s32.totalorder %s12, 1
    %p29 = por %p27, %p28
    %p30 = scmp.ne.s32.totalorder %s22, %s25
    %p31 = scmp.eq.s32.totalorder %s12, 0
    %p32 = por %p30, %p31
    %p33 = scmp.ne.s32.totalorder %s22, %s25
    %p34 = scmp.eq.s32.totalorder %s17, 1
    %p35 = por %p33, %p34
    %p36 = scmp.ne.s32.totalorder %s25, %s26
    %p37 = scmp.eq.s32.totalorder %s17, 0
    %p38 = por %p36, %p37
    %p39 = scmp.ne.s32.totalorder %s25, %s26
    %p40 = scmp.eq.s32.totalorder %s18, 1
    %p41 = por %p39, %p40
    %p43 = scmp.ne.s32.totalorder %s26, %s42
    %p44 = scmp.eq.s32.totalorder %s18, 0
    %p45 = por %p43, %p44
    %s47 = sadd.s32 %s46, 1
    %p50 = scmp.eq.s32.totalorder %s12, 1
    %p51 = scmp.ne.s32.totalorder %s46, %s48
    %p52 = scmp.eq.s32.totalorder %s12, 0
    %p53 = por %p51, %p52
    %p54 = scmp.ne.s32.totalorder %s46, %s48
    %p55 = scmp.eq.s32.totalorder %s17, 1
    %p56 = por %p54, %p55
    %p57 = scmp.ne.s32.totalorder %s48, %s49
    %p58 = scmp.eq.s32.totalorder %s17, 0
    %p59 = por %p57, %p58
    %p60 = scmp.ne.s32.totalorder %s48, %s49
    %p61 = scmp.eq.s32.totalorder %s18, 1
    %p62 = por %p60, %p61
    %p64 = scmp.ne.s32.totalorder %s49, %s63
    %p65 = scmp.eq.s32.totalorder %s18, 0
    %p66 = por %p64, %p65
    %s68 = sadd.s32 %s67, 1
    %p71 = scmp.eq.s32.totalorder %s12, 1
    %p72 = scmp.ne.s32.totalorder %s67, %s69
    %p73 = scmp.eq.s32.totalorder %s12, 0
    %p74 = por %p72, %p73
    %p75 = scmp.ne.s32.totalorder %s67, %s69
    %p76 = scmp.eq.s32.totalorder %s17, 1
    %p77 = por %p75, %p76
    %p78 = scmp.ne.s32.totalorder %s69, %s70
    %p79 = scmp.eq.s32.totalorder %s17, 0
    %p80 = por %p78, %p79
    %p81 = scmp.ne.s32.totalorder %s69, %s70
    %p82 = scmp.eq.s32.totalorder %s18, 1
    %p83 = por %p81, %p82
    %p85 = scmp.ne.s32.totalorder %s70, %s84
    %p86 = scmp.eq.s32.totalorder %s18, 0
    %p87 = por %p85, %p86
    %s89 = sadd.s32 %s88, 1
    %p92 = scmp.eq.s32.totalorder %s12, 1
    %p93 = scmp.ne.s32.totalorder %s88, %s90
    %p94 = scmp.eq.s32.totalorder %s12, 0
    %p95 = por %p93, %p94
    %p96 = scmp.ne.s32.totalorder %s88, %s90
    %p97 = scmp.eq.s32.totalorder %s17, 1
    %p98 = por %p96, %p97
    %p99 = scmp.ne.s32.totalorder %s90, %s91
    %p100 = scmp.eq.s32.totalorder %s17, 0
    %p101 = por %p99, %p100
    %p102 = scmp.ne.s32.totalorder %s90, %s91
    %p103 = scmp.eq.s32.totalorder %s18, 1
    %p104 = por %p102, %p103
    %p106 = scmp.ne.s32.totalorder %s91, %s105
    %p107 = scmp.eq.s32.totalorder %s18, 0
    %p108 = por %p106, %p107
    %s110 = sadd.s32 %s109, 1
    %p113 = scmp.eq.s32.totalorder %s12, 1
    %p114 = scmp.ne.s32.totalorder %s109, %s111
    %p115 = scmp.eq.s32.totalorder %s12, 0
    %p116 = por %p114, %p115
    %p117 = scmp.ne.s32.totalorder %s109, %s111
    %p118 = scmp.eq.s32.totalorder %s17, 1
    %p119 = por %p117, %p118
    %p120 = scmp.ne.s32.totalorder %s111, %s112
    %p121 = scmp.eq.s32.totalorder %s17, 0
    %p122 = por %p120, %p121
    %p123 = scmp.ne.s32.totalorder %s111, %s112
    %p124 = scmp.eq.s32.totalorder %s18, 1
    %p125 = por %p123, %p124
    %p127 = scmp.ne.s32.totalorder %s112, %s126
    %p128 = scmp.eq.s32.totalorder %s18, 0
    %p129 = por %p127, %p128
    %s131 = sadd.s32 %s130, 1
    %p134 = scmp.eq.s32.totalorder %s12, 1
    %p135 = scmp.ne.s32.totalorder %s130, %s132
    %p136 = scmp.eq.s32.totalorder %s12, 0
    %p137 = por %p135, %p136
    %p138 = scmp.ne.s32.totalorder %s130, %s132
    %p139 = scmp.eq.s32.totalorder %s17, 1
    %p140 = por %p138, %p139
    %p141 = scmp.ne.s32.totalorder %s132, %s133
    %p142 = scmp.eq.s32.totalorder %s17, 0
    %p143 = por %p141, %p142
    %p144 = scmp.ne.s32.totalorder %s132, %s133
    %p145 = scmp.eq.s32.totalorder %s18, 1
    %p146 = por %p144, %p145
    %p148 = scmp.ne.s32.totalorder %s133, %s147
    %p149 = scmp.eq.s32.totalorder %s18, 0
    %p150 = por %p148, %p149
    %s151 = ssub.s32 %s12, %s19
    %p152 = scmp.eq.s32.totalorder %s151, 0
    %s154 = sadd.s32 %s153, 1
    %s155 = scalar_select %p152, %s153, %s154
    %p158 = pneg %p152
    %p159 = scmp.eq.s32.totalorder %s12, 1
    %p160 = por %p158, %p159
    %p161 = scmp.ne.s32.totalorder %s153, %s156
    %p162 = scmp.eq.s32.totalorder %s12, 0
    %p163 = por %p161, %p162
    %p164 = scmp.ne.s32.totalorder %s153, %s156
    %p165 = scmp.eq.s32.totalorder %s17, 1
    %p166 = por %p164, %p165
    %p167 = scmp.ne.s32.totalorder %s156, %s157
    %p168 = scmp.eq.s32.totalorder %s17, 0
    %p169 = por %p167, %p168
    %p170 = scmp.ne.s32.totalorder %s156, %s157
    %p171 = scmp.eq.s32.totalorder %s18, 1
    %p172 = por %p170, %p171
    %p174 = scmp.ne.s32.totalorder %s157, %s173
    %p175 = scmp.eq.s32.totalorder %s18, 0
    %p176 = por %p174, %p175
    %p177 = scmp.le.s32.totalorder 1, %s12
    %p178 = scmp.lt.s32.totalorder %s12, 3
    %p179 = pnand %p177, %p178
    %p180 = pneg %p179
    // Predicated region
    $region9: #{tpu_custom_call.1} parent=5 // pred_check
      _
    $region10: #{tpu_custom_call.1} parent=5 // pred_check_branch
      %182 = sbr.rel (%p179) target = $region12
    $region11: #{tpu_custom_call.1} parent=5 // pred_region
      %s183 = ssub.s32 %s12, 1
      // Predicated region
      $region13: #{tpu_custom_call.1} parent=11 // pred_check
        %p184 = pneg %p59
      $region14: #{tpu_custom_call.1} parent=11 // pred_check_branch
        %186 = sbr.rel (%p184) target = $region16
      $region15: #{tpu_custom_call.1} parent=11 // pred_region
        _
      $region16: #{tpu_custom_call.1} parent=11 // pred_fallthru
        _
      // Predicated region
      $region17: #{tpu_custom_call.1} parent=11 // pred_check
        %p187 = pneg %p80
      $region18: #{tpu_custom_call.1} parent=11 // pred_check_branch
        %189 = sbr.rel (%p187) target = $region20
      $region19: #{tpu_custom_call.1} parent=11 // pred_region
        _
      $region20: #{tpu_custom_call.1} parent=11 // pred_fallthru
        _
      // Predicated region
      $region21: #{tpu_custom_call.1} parent=11 // pred_check
        %p190 = pneg %p101
      $region22: #{tpu_custom_call.1} parent=11 // pred_check_branch
        %192 = sbr.rel (%p190) target = $region24
      $region23: #{tpu_custom_call.1} parent=11 // pred_region
        _
      $region24: #{tpu_custom_call.1} parent=11 // pred_fallthru
        _
      // Predicated region
      $region25: #{tpu_custom_call.1} parent=11 // pred_check
        %p193 = pneg %p122
      $region26: #{tpu_custom_call.1} parent=11 // pred_check_branch
        %195 = sbr.rel (%p193) target = $region28
      $region27: #{tpu_custom_call.1} parent=11 // pred_region
        _
      $region28: #{tpu_custom_call.1} parent=11 // pred_fallthru
        _
      // Predicated region
      $region29: #{tpu_custom_call.1} parent=11 // pred_check
        %p196 = pneg %p143
      $region30: #{tpu_custom_call.1} parent=11 // pred_check_branch
        %198 = sbr.rel (%p196) target = $region32
      $region31: #{tpu_custom_call.1} parent=11 // pred_region
        _
      $region32: #{tpu_custom_call.1} parent=11 // pred_fallthru
        _
    $region12: #{tpu_custom_call.1} parent=5 // pred_fallthru
      _
    %p199 = scmp.lt.s32.totalorder %s12, 2
    // Predicated region
    $region33: #{tpu_custom_call.1} parent=5 // pred_check
      %p200 = pneg %p199
    $region34: #{tpu_custom_call.1} parent=5 // pred_check_branch
      %202 = sbr.rel (%p200) target = $region36
    $region35: #{tpu_custom_call.1} parent=5 // pred_region
      // Predicated region
      $region37: #{tpu_custom_call.1} parent=35 // pred_check
        %p203 = pneg %p32
      $region38: #{tpu_custom_call.1} parent=35 // pred_check_branch
        %205 = sbr.rel (%p203) target = $region40
      $region39: #{tpu_custom_call.1} parent=35 // pred_region
        %s206 = smul.u32 32, %s12
        %p207 = scmp.lt.s32.totalorder %s206, 63
        %s208 = scalar_select %p207, %s206, 63
        %s209 = smul.addr %s208, 4
        %s210 = scalar_lea.vmem %s0, %s209
        %s211 = smul.u32 32, %s12
      $region40: #{tpu_custom_call.1} parent=35 // pred_fallthru
        _
    $region36: #{tpu_custom_call.1} parent=5 // pred_fallthru
      _
    %p212 = scmp.le.s32.totalorder 1, %s12
    %p213 = scmp.lt.s32.totalorder %s12, 3
    %p214 = pnand %p212, %p213
    %p215 = pneg %p214
    // Predicated region
    $region41: #{tpu_custom_call.1} parent=5 // pred_check
      _
    $region42: #{tpu_custom_call.1} parent=5 // pred_check_branch
      %217 = sbr.rel (%p214) target = $region44
    $region43: #{tpu_custom_call.1} parent=5 // pred_region
      %s218 = ssub.s32 %s12, 1
      %s219 = smul.u32 32, %s17
      %p220 = scmp.lt.s32.totalorder %s219, 63
      %s221 = scalar_select %p220, %s219, 63
      %s222 = smul.addr %s221, 4
      %s223 = scalar_lea.vmem %s0, %s222
      %p224 = pneg %p38
      %p225 = pneg %p35
      %p226 = pneg %p59
      %p227 = pneg %p56
      %p228 = pneg %p80
      %p229 = pneg %p77
      %p230 = pneg %p101
      %p231 = pneg %p98
      %p232 = pneg %p122
      %p233 = pneg %p119
      %p234 = pneg %p143
      %p235 = pneg %p140
      %p236 = pneg %p169
      %p237 = pneg %p166
      %s238 = smul.u32 32, %s17
      %p239 = scmp.lt.s32.totalorder %s238, 63
      %s240 = scalar_select %p239, %s238, 63
      %s241 = smul.addr %s240, 4
      %s242 = scalar_lea.vmem %s6, %s241
      %s243 = smul.u32 32, %s17
      %p244 = scmp.lt.s32.totalorder %s243, 63
      %s245 = scalar_select %p244, %s243, 63
      %s246 = smul.addr %s245, 4
      %s247 = scalar_lea.vmem %s0, %s246
      %s248 = smul.u32 32, %s17
      %s249 = smul.u32 32, %s17
      %p250 = scmp.lt.s32.totalorder %s249, 63
      %s251 = scalar_select %p250, %s249, 63
      %s252 = smul.addr %s251, 4
      %s253 = scalar_lea.vmem %s6, %s252
      %s254 = smul.u32 32, %s17
      %v256 = vld [vmem:[%s247] sm:$0xf]
      %v257 = vld [vmem:[%s247 + $0x4] sm:$0xf]
      %v258 = vld [vmem:[%s247 + $0x8] sm:$0xf]
      %v259 = vld [vmem:[%s247 + $0xc] sm:$0xf]
      %v260 = vld [vmem:[%s247 + $0x10] sm:$0xf]
      %v261 = vld [vmem:[%s247 + $0x14] sm:$0xf]
      %v262 = vld [vmem:[%s247 + $0x18] sm:$0xf]
      %v263 = vld [vmem:[%s247 + $0x1c] sm:$0xf]
      %v264 = vld [vmem:[%s247 + $0x20] sm:$0xf]
      %v265 = vld [vmem:[%s247 + $0x24] sm:$0xf]
      %v266 = vld [vmem:[%s247 + $0x28] sm:$0xf]
      %v267 = vld [vmem:[%s247 + $0x2c] sm:$0xf]
      %v268 = vld [vmem:[%s247 + $0x30] sm:$0xf]
      %v269 = vld [vmem:[%s247 + $0x34] sm:$0xf]
      %v270 = vld [vmem:[%s247 + $0x38] sm:$0xf]
      %v271 = vld [vmem:[%s247 + $0x3c] sm:$0xf]
      %v272 = vld [vmem:[%s247 + $0x40] sm:$0xf]
      %v273 = vld [vmem:[%s247 + $0x44] sm:$0xf]
      %v274 = vld [vmem:[%s247 + $0x48] sm:$0xf]
      %v275 = vld [vmem:[%s247 + $0x4c] sm:$0xf]
      %v276 = vld [vmem:[%s247 + $0x50] sm:$0xf]
      %v277 = vld [vmem:[%s247 + $0x54] sm:$0xf]
      %v278 = vld [vmem:[%s247 + $0x58] sm:$0xf]
      %v279 = vld [vmem:[%s247 + $0x5c] sm:$0xf]
      %v280 = vld [vmem:[%s247 + $0x60] sm:$0xf]
      %v281 = vld [vmem:[%s247 + $0x64] sm:$0xf]
      %v282 = vld [vmem:[%s247 + $0x68] sm:$0xf]
      %v283 = vld [vmem:[%s247 + $0x6c] sm:$0xf]
      %v284 = vld [vmem:[%s247 + $0x70] sm:$0xf]
      %v285 = vld [vmem:[%s247 + $0x74] sm:$0xf]
      %v286 = vld [vmem:[%s247 + $0x78] sm:$0xf]
      %v287 = vld [vmem:[%s247 + $0x7c] sm:$0xf]
      %v288 = vunpack.c.l.bf16 %v256
      %v289 = vunpack.c.l.bf16 %v257
      %v290 = vunpack.c.l.bf16 %v258
      %v291 = vunpack.c.l.bf16 %v259
      %v292 = vunpack.c.l.bf16 %v260
      %v293 = vunpack.c.l.bf16 %v261
      %v294 = vunpack.c.l.bf16 %v262
      %v295 = vunpack.c.l.bf16 %v263
      %v296 = vunpack.c.l.bf16 %v264
      %v297 = vunpack.c.l.bf16 %v265
      %v298 = vunpack.c.l.bf16 %v266
      %v299 = vunpack.c.l.bf16 %v267
      %v300 = vunpack.c.l.bf16 %v268
      %v301 = vunpack.c.l.bf16 %v269
      %v302 = vunpack.c.l.bf16 %v270
      %v303 = vunpack.c.l.bf16 %v271
      %v304 = vunpack.c.l.bf16 %v272
      %v305 = vunpack.c.l.bf16 %v273
      %v306 = vunpack.c.l.bf16 %v274
      %v307 = vunpack.c.l.bf16 %v275
      %v308 = vunpack.c.l.bf16 %v276
      %v309 = vunpack.c.l.bf16 %v277
      %v310 = vunpack.c.l.bf16 %v278
      %v311 = vunpack.c.l.bf16 %v279
      %v312 = vunpack.c.l.bf16 %v280
      %v313 = vunpack.c.l.bf16 %v281
      %v314 = vunpack.c.l.bf16 %v282
      %v315 = vunpack.c.l.bf16 %v283
      %v316 = vunpack.c.l.bf16 %v284
      %v317 = vunpack.c.l.bf16 %v285
      %v318 = vunpack.c.l.bf16 %v286
      %v319 = vunpack.c.l.bf16 %v287
      %v320 = vld [vmem:[%s2] sm:$0x1]
      %v322 = vperm.slane %v320, 0
      %v324 = vmul.f32 %v288, %v322
      %v325 = vmul.f32 %v289, %v322
      %v326 = vmul.f32 %v290, %v322
      %v327 = vmul.f32 %v291, %v322
      %v328 = vmul.f32 %v292, %v322
      %v329 = vmul.f32 %v293, %v322
      %v330 = vmul.f32 %v294, %v322
      %v331 = vmul.f32 %v295, %v322
      %v332 = vmul.f32 %v296, %v322
      %v333 = vmul.f32 %v297, %v322
      %v334 = vmul.f32 %v298, %v322
      %v335 = vmul.f32 %v299, %v322
      %v336 = vmul.f32 %v300, %v322
      %v337 = vmul.f32 %v301, %v322
      %v338 = vmul.f32 %v302, %v322
      %v339 = vmul.f32 %v303, %v322
      %v340 = vmul.f32 %v304, %v322
      %v341 = vmul.f32 %v305, %v322
      %v342 = vmul.f32 %v306, %v322
      %v343 = vmul.f32 %v307, %v322
      %v344 = vmul.f32 %v308, %v322
      %v345 = vmul.f32 %v309, %v322
      %v346 = vmul.f32 %v310, %v322
      %v347 = vmul.f32 %v311, %v322
      %v348 = vmul.f32 %v312, %v322
      %v349 = vmul.f32 %v313, %v322
      %v350 = vmul.f32 %v314, %v322
      %v351 = vmul.f32 %v315, %v322
      %v352 = vmul.f32 %v316, %v322
      %v353 = vmul.f32 %v317, %v322
      %v354 = vmul.f32 %v318, %v322
      %v355 = vmul.f32 %v319, %v322
      %v356 = vld [vmem:[%s3] sm:$0x1]
      %v358 = vperm.slane %v356, 0
      %v360 = vadd.f32 %v324, %v358
      %v361 = vadd.f32 %v325, %v358
      %v362 = vadd.f32 %v326, %v358
      %v363 = vadd.f32 %v327, %v358
      %v364 = vadd.f32 %v328, %v358
      %v365 = vadd.f32 %v329, %v358
      %v366 = vadd.f32 %v330, %v358
      %v367 = vadd.f32 %v331, %v358
      %v368 = vadd.f32 %v332, %v358
      %v369 = vadd.f32 %v333, %v358
      %v370 = vadd.f32 %v334, %v358
      %v371 = vadd.f32 %v335, %v358
      %v372 = vadd.f32 %v336, %v358
      %v373 = vadd.f32 %v337, %v358
      %v374 = vadd.f32 %v338, %v358
      %v375 = vadd.f32 %v339, %v358
      %v376 = vadd.f32 %v340, %v358
      %v377 = vadd.f32 %v341, %v358
      %v378 = vadd.f32 %v342, %v358
      %v379 = vadd.f32 %v343, %v358
      %v380 = vadd.f32 %v344, %v358
      %v381 = vadd.f32 %v345, %v358
      %v382 = vadd.f32 %v346, %v358
      %v383 = vadd.f32 %v347, %v358
      %v384 = vadd.f32 %v348, %v358
      %v385 = vadd.f32 %v349, %v358
      %v386 = vadd.f32 %v350, %v358
      %v387 = vadd.f32 %v351, %v358
      %v388 = vadd.f32 %v352, %v358
      %v389 = vadd.f32 %v353, %v358
      %v390 = vadd.f32 %v354, %v358
      %v391 = vadd.f32 %v355, %v358
      %v392 = vmax.f32 %v360, 0.0
      %v393 = vmax.f32 %v361, 0.0
      %v394 = vmax.f32 %v362, 0.0
      %v395 = vmax.f32 %v363, 0.0
      %v396 = vmax.f32 %v364, 0.0
      %v397 = vmax.f32 %v365, 0.0
      %v398 = vmax.f32 %v366, 0.0
      %v399 = vmax.f32 %v367, 0.0
      %v400 = vmax.f32 %v368, 0.0
      %v401 = vmax.f32 %v369, 0.0
      %v402 = vmax.f32 %v370, 0.0
      %v403 = vmax.f32 %v371, 0.0
      %v404 = vmax.f32 %v372, 0.0
      %v405 = vmax.f32 %v373, 0.0
      %v406 = vmax.f32 %v374, 0.0
      %v407 = vmax.f32 %v375, 0.0
      %v408 = vmax.f32 %v376, 0.0
      %v409 = vmax.f32 %v377, 0.0
      %v410 = vmax.f32 %v378, 0.0
      %v411 = vmax.f32 %v379, 0.0
      %v412 = vmax.f32 %v380, 0.0
      %v413 = vmax.f32 %v381, 0.0
      %v414 = vmax.f32 %v382, 0.0
      %v415 = vmax.f32 %v383, 0.0
      %v416 = vmax.f32 %v384, 0.0
      %v417 = vmax.f32 %v385, 0.0
      %v418 = vmax.f32 %v386, 0.0
      %v419 = vmax.f32 %v387, 0.0
      %v420 = vmax.f32 %v388, 0.0
      %v421 = vmax.f32 %v389, 0.0
      %v422 = vmax.f32 %v390, 0.0
      %v423 = vmax.f32 %v391, 0.0
      %v424 = vpack.c.bf16 %v393, %v392
      %v425 = vpack.c.bf16 %v395, %v394
      %v426 = vpack.c.bf16 %v397, %v396
      %v427 = vpack.c.bf16 %v399, %v398
      %v428 = vpack.c.bf16 %v401, %v400
      %v429 = vpack.c.bf16 %v403, %v402
      %v430 = vpack.c.bf16 %v405, %v404
      %v431 = vpack.c.bf16 %v407, %v406
      %v432 = vpack.c.bf16 %v409, %v408
      %v433 = vpack.c.bf16 %v411, %v410
      %v434 = vpack.c.bf16 %v413, %v412
      %v435 = vpack.c.bf16 %v415, %v414
      %v436 = vpack.c.bf16 %v417, %v416
      %v437 = vpack.c.bf16 %v419, %v418
      %v438 = vpack.c.bf16 %v421, %v420
      %v439 = vpack.c.bf16 %v423, %v422
      %v440 = vld [vmem:[%s1] sm:$0xf]
      %vm441 = vcmask 64512
      %v443 = vsel %vm441, %v424, 0
      %v446 = vsel %vm441, %v425, 0
      %v449 = vsel %vm441, %v426, 0
      %v452 = vsel %vm441, %v427, 0
      %v455 = vsel %vm441, %v428, 0
      %v458 = vsel %vm441, %v429, 0
      %v461 = vsel %vm441, %v430, 0
      %v464 = vsel %vm441, %v431, 0
      %v467 = vsel %vm441, %v432, 0
      %v470 = vsel %vm441, %v433, 0
      %v473 = vsel %vm441, %v434, 0
      %v476 = vsel %vm441, %v435, 0
      %v479 = vsel %vm441, %v436, 0
      %v482 = vsel %vm441, %v437, 0
      %v485 = vsel %vm441, %v438, 0
      %v488 = vsel %vm441, %v439, 0
      %vm490 = vcmask 1043456
      %v492 = vsel %vm490, %v440, 0
      %494 = vmatpush.bf16.msra.mxu0 0
      %495 = vmatpush.bf16.msra.mxu0 0
      %496 = vmatpush.bf16.msra.mxu0 0
      %497 = vmatpush.bf16.msra.mxu0 0
      %498 = vmatpush.bf16.msra.mxu0 0
      %499 = vmatpush.bf16.msra.mxu0 0
      %500 = vmatpush.bf16.msra.mxu0 0
      %501 = vmatpush.bf16.msra.mxu0 %v492
      %502 = vmatmul.bf16.gmra.mxu0 %v443
      %v503 = vpop.f32.mrf.mxu0
      %v504 = vadd.f32 0.0, %v503
      %v505 = vpop.f32.mrf.mxu0
      %v506 = vadd.f32 0.0, %v505
      %507 = vmatmul.bf16.gmra.mxu0 %v446
      %v508 = vpop.f32.mrf.mxu0
      %v509 = vadd.f32 0.0, %v508
      %v510 = vpop.f32.mrf.mxu0
      %v511 = vadd.f32 0.0, %v510
      %512 = vmatmul.bf16.gmra.mxu0 %v449
      %v513 = vpop.f32.mrf.mxu0
      %v514 = vadd.f32 0.0, %v513
      %v515 = vpop.f32.mrf.mxu0
      %v516 = vadd.f32 0.0, %v515
      %517 = vmatmul.bf16.gmra.mxu0 %v452
      %v518 = vpop.f32.mrf.mxu0
      %v519 = vadd.f32 0.0, %v518
      %v520 = vpop.f32.mrf.mxu0
      %v521 = vadd.f32 0.0, %v520
      %522 = vmatmul.bf16.gmra.mxu0 %v455
      %v523 = vpop.f32.mrf.mxu0
      %v524 = vadd.f32 0.0, %v523
      %v525 = vpop.f32.mrf.mxu0
      %v526 = vadd.f32 0.0, %v525
      %527 = vmatmul.bf16.gmra.mxu0 %v458
      %v528 = vpop.f32.mrf.mxu0
      %v529 = vadd.f32 0.0, %v528
      %v530 = vpop.f32.mrf.mxu0
      %v531 = vadd.f32 0.0, %v530
      %532 = vmatmul.bf16.gmra.mxu0 %v461
      %v533 = vpop.f32.mrf.mxu0
      %v534 = vadd.f32 0.0, %v533
      %v535 = vpop.f32.mrf.mxu0
      %v536 = vadd.f32 0.0, %v535
      %537 = vmatmul.bf16.gmra.mxu0 %v464
      %v538 = vpop.f32.mrf.mxu0
      %v539 = vadd.f32 0.0, %v538
      %v540 = vpop.f32.mrf.mxu0
      %v541 = vadd.f32 0.0, %v540
      %542 = vmatmul.bf16.gmra.mxu0 %v467
      %v543 = vpop.f32.mrf.mxu0
      %v544 = vadd.f32 0.0, %v543
      %v545 = vpop.f32.mrf.mxu0
      %v546 = vadd.f32 0.0, %v545
      %547 = vmatmul.bf16.gmra.mxu0 %v470
      %v548 = vpop.f32.mrf.mxu0
      %v549 = vadd.f32 0.0, %v548
      %v550 = vpop.f32.mrf.mxu0
      %v551 = vadd.f32 0.0, %v550
      %552 = vmatmul.bf16.gmra.mxu0 %v473
      %v553 = vpop.f32.mrf.mxu0
      %v554 = vadd.f32 0.0, %v553
      %v555 = vpop.f32.mrf.mxu0
      %v556 = vadd.f32 0.0, %v555
      %557 = vmatmul.bf16.gmra.mxu0 %v476
      %v558 = vpop.f32.mrf.mxu0
      %v559 = vadd.f32 0.0, %v558
      %v560 = vpop.f32.mrf.mxu0
      %v561 = vadd.f32 0.0, %v560
      %562 = vmatmul.bf16.gmra.mxu0 %v479
      %v563 = vpop.f32.mrf.mxu0
      %v564 = vadd.f32 0.0, %v563
      %v565 = vpop.f32.mrf.mxu0
      %v566 = vadd.f32 0.0, %v565
      %567 = vmatmul.bf16.gmra.mxu0 %v482
      %v568 = vpop.f32.mrf.mxu0
      %v569 = vadd.f32 0.0, %v568
      %v570 = vpop.f32.mrf.mxu0
      %v571 = vadd.f32 0.0, %v570
      %572 = vmatmul.bf16.gmra.mxu0 %v485
      %v573 = vpop.f32.mrf.mxu0
      %v574 = vadd.f32 0.0, %v573
      %v575 = vpop.f32.mrf.mxu0
      %v576 = vadd.f32 0.0, %v575
      %577 = vmatmul.bf16.gmra.mxu0 %v488
      %v578 = vpop.f32.mrf.mxu0
      %v579 = vadd.f32 0.0, %v578
      %v580 = vpop.f32.mrf.mxu0
      %v581 = vadd.f32 0.0, %v580
      %582 = vdwg.mxu0
      %v583 = vld [vmem:[%s4] sm:$0x1]
      %v585 = vperm.slane %v583, 0
      %v587 = vmul.f32 %v504, %v585
      %v588 = vmul.f32 %v506, %v585
      %v589 = vmul.f32 %v509, %v585
      %v590 = vmul.f32 %v511, %v585
      %v591 = vmul.f32 %v514, %v585
      %v592 = vmul.f32 %v516, %v585
      %v593 = vmul.f32 %v519, %v585
      %v594 = vmul.f32 %v521, %v585
      %v595 = vmul.f32 %v524, %v585
      %v596 = vmul.f32 %v526, %v585
      %v597 = vmul.f32 %v529, %v585
      %v598 = vmul.f32 %v531, %v585
      %v599 = vmul.f32 %v534, %v585
      %v600 = vmul.f32 %v536, %v585
      %v601 = vmul.f32 %v539, %v585
      %v602 = vmul.f32 %v541, %v585
      %v603 = vmul.f32 %v544, %v585
      %v604 = vmul.f32 %v546, %v585
      %v605 = vmul.f32 %v549, %v585
      %v606 = vmul.f32 %v551, %v585
      %v607 = vmul.f32 %v554, %v585
      %v608 = vmul.f32 %v556, %v585
      %v609 = vmul.f32 %v559, %v585
      %v610 = vmul.f32 %v561, %v585
      %v611 = vmul.f32 %v564, %v585
      %v612 = vmul.f32 %v566, %v585
      %v613 = vmul.f32 %v569, %v585
      %v614 = vmul.f32 %v571, %v585
      %v615 = vmul.f32 %v574, %v585
      %v616 = vmul.f32 %v576, %v585
      %v617 = vmul.f32 %v579, %v585
      %v618 = vmul.f32 %v581, %v585
      %v619 = vld [vmem:[%s5] sm:$0x1]
      %v621 = vperm.slane %v619, 0
      %v623 = vadd.f32 %v587, %v621
      %v624 = vadd.f32 %v588, %v621
      %v625 = vadd.f32 %v589, %v621
      %v626 = vadd.f32 %v590, %v621
      %v627 = vadd.f32 %v591, %v621
      %v628 = vadd.f32 %v592, %v621
      %v629 = vadd.f32 %v593, %v621
      %v630 = vadd.f32 %v594, %v621
      %v631 = vadd.f32 %v595, %v621
      %v632 = vadd.f32 %v596, %v621
      %v633 = vadd.f32 %v597, %v621
      %v634 = vadd.f32 %v598, %v621
      %v635 = vadd.f32 %v599, %v621
      %v636 = vadd.f32 %v600, %v621
      %v637 = vadd.f32 %v601, %v621
      %v638 = vadd.f32 %v602, %v621
      %v639 = vadd.f32 %v603, %v621
      %v640 = vadd.f32 %v604, %v621
      %v641 = vadd.f32 %v605, %v621
      %v642 = vadd.f32 %v606, %v621
      %v643 = vadd.f32 %v607, %v621
      %v644 = vadd.f32 %v608, %v621
      %v645 = vadd.f32 %v609, %v621
      %v646 = vadd.f32 %v610, %v621
      %v647 = vadd.f32 %v611, %v621
      %v648 = vadd.f32 %v612, %v621
      %v649 = vadd.f32 %v613, %v621
      %v650 = vadd.f32 %v614, %v621
      %v651 = vadd.f32 %v615, %v621
      %v652 = vadd.f32 %v616, %v621
      %v653 = vadd.f32 %v617, %v621
      %v654 = vadd.f32 %v618, %v621
      %v655 = vmax.f32 %v623, 0.0
      %v656 = vmax.f32 %v624, 0.0
      %v657 = vmax.f32 %v625, 0.0
      %v658 = vmax.f32 %v626, 0.0
      %v659 = vmax.f32 %v627, 0.0
      %v660 = vmax.f32 %v628, 0.0
      %v661 = vmax.f32 %v629, 0.0
      %v662 = vmax.f32 %v630, 0.0
      %v663 = vmax.f32 %v631, 0.0
      %v664 = vmax.f32 %v632, 0.0
      %v665 = vmax.f32 %v633, 0.0
      %v666 = vmax.f32 %v634, 0.0
      %v667 = vmax.f32 %v635, 0.0
      %v668 = vmax.f32 %v636, 0.0
      %v669 = vmax.f32 %v637, 0.0
      %v670 = vmax.f32 %v638, 0.0
      %v671 = vmax.f32 %v639, 0.0
      %v672 = vmax.f32 %v640, 0.0
      %v673 = vmax.f32 %v641, 0.0
      %v674 = vmax.f32 %v642, 0.0
      %v675 = vmax.f32 %v643, 0.0
      %v676 = vmax.f32 %v644, 0.0
      %v677 = vmax.f32 %v645, 0.0
      %v678 = vmax.f32 %v646, 0.0
      %v679 = vmax.f32 %v647, 0.0
      %v680 = vmax.f32 %v648, 0.0
      %v681 = vmax.f32 %v649, 0.0
      %v682 = vmax.f32 %v650, 0.0
      %v683 = vmax.f32 %v651, 0.0
      %v684 = vmax.f32 %v652, 0.0
      %v685 = vmax.f32 %v653, 0.0
      %v686 = vmax.f32 %v654, 0.0
      %v687 = vpack.c.bf16 %v655, %v655
      %v688 = vpack.c.bf16 %v656, %v656
      %v689 = vpack.c.bf16 %v657, %v657
      %v690 = vpack.c.bf16 %v658, %v658
      %v691 = vpack.c.bf16 %v659, %v659
      %v692 = vpack.c.bf16 %v660, %v660
      %v693 = vpack.c.bf16 %v661, %v661
      %v694 = vpack.c.bf16 %v662, %v662
      %v695 = vpack.c.bf16 %v663, %v663
      %v696 = vpack.c.bf16 %v664, %v664
      %v697 = vpack.c.bf16 %v665, %v665
      %v698 = vpack.c.bf16 %v666, %v666
      %v699 = vpack.c.bf16 %v667, %v667
      %v700 = vpack.c.bf16 %v668, %v668
      %v701 = vpack.c.bf16 %v669, %v669
      %v702 = vpack.c.bf16 %v670, %v670
      %v703 = vpack.c.bf16 %v671, %v671
      %v704 = vpack.c.bf16 %v672, %v672
      %v705 = vpack.c.bf16 %v673, %v673
      %v706 = vpack.c.bf16 %v674, %v674
      %v707 = vpack.c.bf16 %v675, %v675
      %v708 = vpack.c.bf16 %v676, %v676
      %v709 = vpack.c.bf16 %v677, %v677
      %v710 = vpack.c.bf16 %v678, %v678
      %v711 = vpack.c.bf16 %v679, %v679
      %v712 = vpack.c.bf16 %v680, %v680
      %v713 = vpack.c.bf16 %v681, %v681
      %v714 = vpack.c.bf16 %v682, %v682
      %v715 = vpack.c.bf16 %v683, %v683
      %v716 = vpack.c.bf16 %v684, %v684
      %v717 = vpack.c.bf16 %v685, %v685
      %v718 = vpack.c.bf16 %v686, %v686
      %vm719 = vcmask 27648
      %720 = vst.msk [vmem:[%s253] sm:$0xf] %vm719, %v687
      %721 = vst.msk [vmem:[%s253 + $0x4] sm:$0xf] %vm719, %v688
      %722 = vst.msk [vmem:[%s253 + $0x8] sm:$0xf] %vm719, %v689
      %723 = vst.msk [vmem:[%s253 + $0xc] sm:$0xf] %vm719, %v690
      %724 = vst.msk [vmem:[%s253 + $0x10] sm:$0xf] %vm719, %v691
      %725 = vst.msk [vmem:[%s253 + $0x14] sm:$0xf] %vm719, %v692
      %726 = vst.msk [vmem:[%s253 + $0x18] sm:$0xf] %vm719, %v693
      %727 = vst.msk [vmem:[%s253 + $0x1c] sm:$0xf] %vm719, %v694
      %728 = vst.msk [vmem:[%s253 + $0x20] sm:$0xf] %vm719, %v695
      %729 = vst.msk [vmem:[%s253 + $0x24] sm:$0xf] %vm719, %v696
      %730 = vst.msk [vmem:[%s253 + $0x28] sm:$0xf] %vm719, %v697
      %731 = vst.msk [vmem:[%s253 + $0x2c] sm:$0xf] %vm719, %v698
      %732 = vst.msk [vmem:[%s253 + $0x30] sm:$0xf] %vm719, %v699
      %733 = vst.msk [vmem:[%s253 + $0x34] sm:$0xf] %vm719, %v700
      %734 = vst.msk [vmem:[%s253 + $0x38] sm:$0xf] %vm719, %v701
      %735 = vst.msk [vmem:[%s253 + $0x3c] sm:$0xf] %vm719, %v702
      %736 = vst.msk [vmem:[%s253 + $0x40] sm:$0xf] %vm719, %v703
      %737 = vst.msk [vmem:[%s253 + $0x44] sm:$0xf] %vm719, %v704
      %738 = vst.msk [vmem:[%s253 + $0x48] sm:$0xf] %vm719, %v705
      %739 = vst.msk [vmem:[%s253 + $0x4c] sm:$0xf] %vm719, %v706
      %740 = vst.msk [vmem:[%s253 + $0x50] sm:$0xf] %vm719, %v707
      %741 = vst.msk [vmem:[%s253 + $0x54] sm:$0xf] %vm719, %v708
      %742 = vst.msk [vmem:[%s253 + $0x58] sm:$0xf] %vm719, %v709
      %743 = vst.msk [vmem:[%s253 + $0x5c] sm:$0xf] %vm719, %v710
      %744 = vst.msk [vmem:[%s253 + $0x60] sm:$0xf] %vm719, %v711
      %745 = vst.msk [vmem:[%s253 + $0x64] sm:$0xf] %vm719, %v712
      %746 = vst.msk [vmem:[%s253 + $0x68] sm:$0xf] %vm719, %v713
      %747 = vst.msk [vmem:[%s253 + $0x6c] sm:$0xf] %vm719, %v714
      %748 = vst.msk [vmem:[%s253 + $0x70] sm:$0xf] %vm719, %v715
      %749 = vst.msk [vmem:[%s253 + $0x74] sm:$0xf] %vm719, %v716
      %750 = vst.msk [vmem:[%s253 + $0x78] sm:$0xf] %vm719, %v717
      %751 = vst.msk [vmem:[%s253 + $0x7c] sm:$0xf] %vm719, %v718
      %s752 = smul.u32 32, %s17
      %p753 = scmp.lt.s32.totalorder %s752, 63
      %s754 = scalar_select %p753, %s752, 63
      %s755 = smul.addr %s754, 4
      %s756 = scalar_lea.vmem %s6, %s755
      // Predicated region
      $region45: #{tpu_custom_call.1} parent=43 // pred_check
        %p757 = pneg %p166
      $region46: #{tpu_custom_call.1} parent=43 // pred_check_branch
        %759 = sbr.rel (%p757) target = $region48
      $region47: #{tpu_custom_call.1} parent=43 // pred_region
        %s760 = smul.u32 32, %s17
      $region48: #{tpu_custom_call.1} parent=43 // pred_fallthru
        _
    $region44: #{tpu_custom_call.1} parent=5 // pred_fallthru
      _
    %p761 = scmp.le.s32.totalorder 2, %s12
    // Predicated region
    $region49: #{tpu_custom_call.1} parent=5 // pred_check
      %p762 = pneg %p761
    $region50: #{tpu_custom_call.1} parent=5 // pred_check_branch
      %764 = sbr.rel (%p762) target = $region52
    $region51: #{tpu_custom_call.1} parent=5 // pred_region
      %s765 = ssub.s32 %s12, 2
      // Predicated region
      $region53: #{tpu_custom_call.1} parent=51 // pred_check
        %p766 = pneg %p172
      $region54: #{tpu_custom_call.1} parent=51 // pred_check_branch
        %768 = sbr.rel (%p766) target = $region56
      $region55: #{tpu_custom_call.1} parent=51 // pred_region
        %s769 = smul.u32 32, %s18
        %p770 = scmp.lt.s32.totalorder %s769, 63
        %s771 = scalar_select %p770, %s769, 63
        %s772 = smul.addr %s771, 4
        %s773 = scalar_lea.vmem %s6, %s772
      $region56: #{tpu_custom_call.1} parent=51 // pred_fallthru
        _
    $region52: #{tpu_custom_call.1} parent=5 // pred_fallthru
      _
  $region6: #{tpu_custom_call.1} parent=0 // loop_footer
    %s16 = sadd.s32 1, %s12
  $region7: #{tpu_custom_call.1} parent=0 // loop_footer_branch
    %11 = sbr.rel target = $region3
  $region8: #{tpu_custom_call.1} parent=0 // loop_exit
    _

</llo_original>
